<compile_context>
chip_gen: v5e
topology: v5e:2x2
jax: 0.10.0
libtpu: 0.0.40
codegen_flags: <defaults>
</compile_context>

<pallas_src>
import jax
import jax.numpy as jnp
from jax import lax
from jax.experimental import pallas as pl
from jax.experimental.pallas import tpu as pltpu


# ----------------------------------------------------------------------------
# Hardware-aware sizing helpers
# ----------------------------------------------------------------------------
def _vmem_capacity_bytes():
    """Best-effort per-core VMEM capacity; conservative fallback."""
    try:
        v = int(pltpu.get_tpu_info().vmem_capacity_bytes)
        if v > 0:
            return v
    except Exception:
        pass
    try:
        kind = jax.devices()[0].device_kind.lower()
        if "v7" in kind:
            return 64 << 20
        return 128 << 20
    except Exception:
        return 64 << 20


def _pick_tile(C, S, itemsize, budget_bytes):
    """Lane-dense S tile: multiple of 128, sized by bytes only, never > S."""
    max_lanes = max(128, ((budget_bytes // (C * itemsize)) // 128) * 128)
    s_floor = max(128, (S // 128) * 128)     # caller guarantees S >= 128 here
    return int(min(max_lanes, s_floor))


# ----------------------------------------------------------------------------
# Fused single-pass kernel: sum -> tiny VPU MLP -> scale  (slab fits VMEM)
# ----------------------------------------------------------------------------
def _make_fused_kernel(C, S):
    n_full = S // 128
    tail = S - n_full * 128
    inv_s = 1.0 / float(S)

    def kernel(x_ref, w1t_ref, w2_ref, o_ref):
        # Channel sums: lane-dense f32 accumulation on the VPU.
        def body(k, acc):
            off = pl.multiple_of(k * 128, 128)
            return acc + x_ref[0, :, pl.ds(off, 128)].astype(jnp.float32)

        part = lax.fori_loop(0, n_full, body, jnp.zeros((C, 128), jnp.float32))
        m = jnp.sum(part, axis=-1, keepdims=True)                  # (C, 1)
        if tail:
            tl = x_ref[0, :, n_full * 128:S].astype(jnp.float32)   # (C, tail)
            m = m + jnp.sum(tl, axis=-1, keepdims=True)
        m = m * inv_s

        # Tiny gating MLP on the VPU (no N=1 MXU matvecs, no transposes):
        # w1t: (C, Cr) = w1.T,  w2: (C, Cr)
        h = jnp.maximum(jnp.sum(w1t_ref[...] * m, axis=0, keepdims=True), 0.0)   # (1, Cr)
        gate = jax.nn.sigmoid(jnp.sum(w2_ref[...] * h, axis=-1, keepdims=True))  # (C, 1)

        o_ref[0] = x_ref[0] * gate.astype(o_ref.dtype)

    return kernel


def _se_fused(x_flat, w1, w2, S, vmem_cap):
    B, C, _ = x_flat.shape
    itemsize = x_flat.dtype.itemsize
    slab_bytes = C * S * itemsize
    Cr = w1.shape[0]

    w1t = jnp.asarray(w1, jnp.float32).T          # (C, Cr)
    w2f = jnp.asarray(w2, jnp.float32)            # (C, Cr)

    # 2x double-buffered input + 2x output slabs + headroom.
    vmem_limit = min(max(4 * slab_bytes + (4 << 20), 16 << 20), vmem_cap - (8 << 20))

    return pl.pallas_call(
        _make_fused_kernel(C, S),
        out_shape=jax.ShapeDtypeStruct((B, C, S), x_flat.dtype),
        grid_spec=pltpu.PrefetchScalarGridSpec(
            num_scalar_prefetch=0,
            grid=(B,),
            in_specs=[
                pl.BlockSpec((1, C, S), lambda b: (b, 0, 0)),
                pl.BlockSpec((C, Cr), lambda b: (0, 0)),
                pl.BlockSpec((C, Cr), lambda b: (0, 0)),
            ],
            out_specs=pl.BlockSpec((1, C, S), lambda b: (b, 0, 0)),
        ),
        compiler_params=pltpu.CompilerParams(
            dimension_semantics=("parallel",),
            vmem_limit_bytes=int(vmem_limit),
        ),
    )(x_flat, w1t, w2f)


# ----------------------------------------------------------------------------
# Two-pass tiled path (slab does not fit VMEM)
# Pass 1: channel sums, grid (n_split, B, tiles); lane-dense (C, 128) partials.
# ----------------------------------------------------------------------------
def _make_reduce_kernel(C, ts, n_tiles, tiles_per_split, n_split, S):
    full_k = ts // 128
    rem = S - (n_tiles - 1) * ts              # elements in the last real tile
    last_k = rem // 128
    tail = rem - last_k * 128                 # ragged lanes (0..127)
    ragged = rem < ts
    padded = n_split * tiles_per_split > n_tiles

    def _accum(x_ref, acc_ref, k_slices, tail_lanes):
        def body(k, acc):
            off = pl.multiple_of(k * 128, 128)
            return acc + x_ref[0, :, pl.ds(off, 128)].astype(jnp.float32)

        part = lax.fori_loop(0, k_slices, body, jnp.zeros((C, 128), jnp.float32))
        if tail_lanes:
            lane = lax.broadcasted_iota(jnp.int32, (C, 128), 1)
            sl = x_ref[0, :, pl.ds(k_slices * 128, 128)].astype(jnp.float32)
            part = part + jnp.where(lane < tail_lanes, sl, 0.0)
        acc_ref[0, 0] += part

    def kernel(x_ref, acc_ref):
        p = pl.program_id(0)
        s = pl.program_id(2)

        @pl.when(s == 0)
        def _():
            acc_ref[...] = jnp.zeros_like(acc_ref)

        g = p * tiles_per_split + s           # global tile index

        if ragged or padded:
            last_full = n_tiles - 1 if ragged else n_tiles

            @pl.when(g < last_full)
            def _():
                _accum(x_ref, acc_ref, full_k, 0)

            if ragged:
                @pl.when(g == n_tiles - 1)
                def _():
                    _accum(x_ref, acc_ref, last_k, tail)
        else:
            _accum(x_ref, acc_ref, full_k, 0)

    return kernel


def _se_scale_kernel(x_ref, s_ref, o_ref):
    # x_ref: (1, C, ts); s_ref: (1, C, 1); o_ref: (1, C, ts)
    o_ref[0] = x_ref[0] * s_ref[0]


def _se_two_pass(x_flat, w1, w2, S, tile1_budget, tile2_budget):
    B, C, _ = x_flat.shape
    itemsize = x_flat.dtype.itemsize

    # --- Pass 1: tiled channel sums, 2-way partial-sum split for megacore -----
    ts1 = _pick_tile(C, S, itemsize, tile1_budget)
    n_tiles = int(pl.cdiv(S, ts1))
    n_split = 2 if n_tiles >= 2 else 1
    tps = int(pl.cdiv(n_tiles, n_split))

    vmem1 = max(2 * C * ts1 * itemsize + (4 << 20), 16 << 20)

    partials = pl.pallas_call(
        _make_reduce_kernel(C, ts1, n_tiles, tps, n_split, S),
        out_shape=jax.ShapeDtypeStruct((n_split, B, C, 128), jnp.float32),
        grid_spec=pltpu.PrefetchScalarGridSpec(
            num_scalar_prefetch=0,
            grid=(n_split, B, tps),
            in_specs=[pl.BlockSpec(
                (1, C, ts1),
                lambda p, b, s: (b, 0, jnp.minimum(p * tps + s, n_tiles - 1)))],
            out_specs=pl.BlockSpec((1, 1, C, 128), lambda p, b, s: (p, b, 0, 0)),
        ),
        compiler_params=pltpu.CompilerParams(
            dimension_semantics=("parallel", "parallel", "arbitrary"),
            vmem_limit_bytes=int(vmem1),
        ),
    )(x_flat)

    # --- Gating MLP on the tiny (B, C) means: plain JAX ----------------------
    sums = jnp.sum(partials, axis=(0, 3))                       # (B, C) f32
    m = sums / jnp.float32(S)
    h = jnp.maximum(m @ jnp.asarray(w1, jnp.float32).T, 0.0)    # (B, C//r)
    gate = jax.nn.sigmoid(h @ jnp.asarray(w2, jnp.float32).T)   # (B, C)
    gate = gate[:, :, None].astype(x_flat.dtype)                # (B, C, 1)

    # --- Pass 2: tiled broadcast multiply (ragged output block is masked) -----
    ts2 = _pick_tile(C, S, itemsize, tile2_budget)
    n2 = int(pl.cdiv(S, ts2))
    vmem2 = max(4 * C * ts2 * itemsize + (4 << 20), 16 << 20)

    return pl.pallas_call(
        _se_scale_kernel,
        out_shape=jax.ShapeDtypeStruct((B, C, S), x_flat.dtype),
        grid_spec=pltpu.PrefetchScalarGridSpec(
            num_scalar_prefetch=0,
            grid=(B, n2),
            in_specs=[
                pl.BlockSpec((1, C, ts2), lambda b, s: (b, 0, s)),
                pl.BlockSpec((1, C, 1), lambda b, s: (b, 0, 0)),
            ],
            out_specs=pl.BlockSpec((1, C, ts2), lambda b, s: (b, 0, s)),
        ),
        compiler_params=pltpu.CompilerParams(
            dimension_semantics=("parallel", "parallel"),
            vmem_limit_bytes=int(vmem2),
        ),
    )(x_flat, gate)


# ----------------------------------------------------------------------------
# Public entry point
# ----------------------------------------------------------------------------
def squeeze_excitation_3d(x, w1, w2, *, force_two_pass=False, tile_bytes_override=None):
    """x: (B, C, D, H, W); w1: (C//r, C); w2: (C, C//r) (PyTorch Linear layout)."""
    B, C, D, H, W = x.shape
    S = D * H * W
    x_flat = x.reshape(B, C, S)
    itemsize = x.dtype.itemsize

    vmem_cap = _vmem_capacity_bytes()
    slab_bytes = C * S * itemsize

    use_fused = (slab_bytes <= vmem_cap // 6) and not force_two_pass
    if S < 128:                      # tiny volumes always fit; avoid ragged tiling
        use_fused = True

    if use_fused:
        out_flat = _se_fused(x_flat, w1, w2, S, vmem_cap)
    else:
        # Per-generation per-tile budgets (pass-2 peak = 4 tiles; pass 1 = 2 tiles).
        tile2 = (5 << 20) if vmem_cap <= (64 << 20) else (12 << 20)
        if tile_bytes_override is not None:
            tile2 = int(tile_bytes_override)
        tile1 = 2 * tile2
        out_flat = _se_two_pass(x_flat, w1, w2, S, tile1, tile2)

    return out_flat.reshape(B, C, D, H, W)


def reference(x, w1, w2):
    # Pure-JAX reference matching the PyTorch Squeeze_Excitation3D semantics.
    xf = x.astype(jnp.float32)
    m = jnp.mean(xf, axis=(2, 3, 4))                            # (B, C)
    h = jnp.maximum(m @ w1.T, 0.0)                              # (B, C//r)
    s = jax.nn.sigmoid(h @ w2.T)                                # (B, C)
    return (xf * s[:, :, None, None, None]).astype(x.dtype)


if __name__ == "__main__":
    key = jax.random.PRNGKey(0)
    kx, k1, k2, kx2, kx3 = jax.random.split(key, 5)

    # Shapes consistent with ResUNet++ SE blocks (channel=16, r=8).
    B, C, r = 2, 16, 8
    Cr = C // r
    w1 = jax.random.normal(k1, (Cr, C), dtype=jnp.float32) * 0.2
    w2 = jax.random.normal(k2, (C, Cr), dtype=jnp.float32) * 0.2

    # 1) Fused single-pass path (slab fits VMEM), with a non-128-multiple S.
    x1 = jax.random.normal(kx, (B, C, 8, 8, 9), dtype=jnp.float32)      # S = 576
    out1 = jax.block_until_ready(squeeze_excitation_3d(x1, w1, w2))
    assert out1.shape == x1.shape
    assert jnp.allclose(out1, reference(x1, w1, w2), atol=1e-5, rtol=1e-5)

    # 2) Two-pass tiled path: ragged last tile + 2-way partial-sum split axis.
    x2 = jax.random.normal(kx2, (B, C, 8, 10, 10), dtype=jnp.float32)   # S = 800
    out2 = jax.block_until_ready(
        squeeze_excitation_3d(x2, w1, w2, force_two_pass=True,
                              tile_bytes_override=16 * 1024))           # ts = 256
    assert jnp.allclose(out2, reference(x2, w1, w2), atol=1e-5, rtol=1e-5)

    # 3) Two-pass path where the split grid has a padded (skipped) tile.
    x3 = jax.random.normal(kx3, (1, C, 8, 8, 10), dtype=jnp.float32)    # S = 640
    out3 = jax.block_until_ready(
        squeeze_excitation_3d(x3, w1, w2, force_two_pass=True,
                              tile_bytes_override=16 * 1024))           # 3 tiles -> 2x2
    assert jnp.allclose(out3, reference(x3, w1, w2), atol=1e-5, rtol=1e-5)

    # 4) bf16 activations through the fused path (halved HBM traffic).
    xb = x1.astype(jnp.bfloat16)
    outb = jax.block_until_ready(squeeze_excitation_3d(xb, w1, w2))
    assert outb.dtype == jnp.bfloat16
    assert jnp.allclose(outb.astype(jnp.float32),
                        reference(xb, w1, w2).astype(jnp.float32),
                        atol=3e-2, rtol=3e-2)

    print("KERNEL_OK")
</pallas_src>

<mosaic_0001>
module attributes {stable_mosaic.version = 11 : i64} {
  func.func @kernel(%arg0: i32, %arg1: memref<1x16x576xf32, #tpu.memory_space<vmem>>, %arg2: memref<16x2xf32, #tpu.memory_space<vmem>>, %arg3: memref<16x2xf32, #tpu.memory_space<vmem>>, %arg4: memref<1x16x576xf32, #tpu.memory_space<vmem>>) attributes {dimension_semantics = [#tpu.dimension_semantics<parallel>], iteration_bounds = array<i64: 2>, scalar_prefetch = 0 : i64, scratch_operands = 0 : i64, tpu.core_type = #tpu.core_type<tc>, window_params = [{transform_indices = @transform_0, window_bounds = array<i64: 1, 16, 576>}, {pipeline_mode = #tpu.pipeline_mode<synchronous>, transform_indices = @transform_1, window_bounds = array<i64: 16, 2>}, {pipeline_mode = #tpu.pipeline_mode<synchronous>, transform_indices = @transform_2, window_bounds = array<i64: 16, 2>}, {transform_indices = @transform_3, window_bounds = array<i64: 1, 16, 576>}]} {
    %cst = arith.constant 0.000000e+00 : f32
    %0 = vector.broadcast %cst : f32 to vector<16x128xf32>
    %c0_i32 = arith.constant 0 : i32
    %c4_i32 = arith.constant 4 : i32
    %1 = arith.addi %c0_i32, %c4_i32 : i32
    %c1_i32 = arith.constant 1 : i32
    %2 = scf.for %arg5 = %c0_i32 to %1 step %c1_i32 iter_args(%arg6 = %0) -> (vector<16x128xf32>)  : i32 {
      %c128_i32 = arith.constant 128 : i32
      %36 = arith.muli %arg5, %c128_i32 : i32
      %37 = tpu.assume_multiple %36, 128 : i32
      %c0_19 = arith.constant 0 : index
      %c0_20 = arith.constant 0 : index
      %38 = arith.index_cast %37 : i32 to index
      %39 = vector.load %arg1[%c0_19, %c0_20, %38] : memref<1x16x576xf32, #tpu.memory_space<vmem>>, vector<1x16x128xf32>
      %40 = vector.shape_cast %39 : vector<1x16x128xf32> to vector<16x128xf32>
      %41 = arith.addf %arg6, %40 : vector<16x128xf32>
      scf.yield %41 : vector<16x128xf32>
    }
    %c4_i32_0 = arith.constant 4 : i32
    %cst_1 = arith.constant dense<0.000000e+00> : vector<16xf32>
    %3 = vector.multi_reduction <add>, %2, %cst_1 [1] : vector<16x128xf32> to vector<16xf32>
    %4 = vector.shape_cast %3 : vector<16xf32> to vector<16x1xf32>
    %c0 = arith.constant 0 : index
    %c0_2 = arith.constant 0 : index
    %c512 = arith.constant 512 : index
    %5 = vector.load %arg1[%c0, %c0_2, %c512] : memref<1x16x576xf32, #tpu.memory_space<vmem>>, vector<1x16x64xf32>
    %6 = vector.shape_cast %5 : vector<1x16x64xf32> to vector<16x64xf32>
    %cst_3 = arith.constant dense<0.000000e+00> : vector<16xf32>
    %7 = vector.multi_reduction <add>, %6, %cst_3 [1] : vector<16x64xf32> to vector<16xf32>
    %8 = vector.shape_cast %7 : vector<16xf32> to vector<16x1xf32>
    %9 = arith.addf %4, %8 : vector<16x1xf32>
    %cst_4 = arith.constant 0.00173611112 : f32
    %10 = vector.broadcast %cst_4 : f32 to vector<16x1xf32>
    %11 = arith.mulf %9, %10 : vector<16x1xf32>
    %c0_5 = arith.constant 0 : index
    %c0_6 = arith.constant 0 : index
    %12 = vector.load %arg2[%c0_5, %c0_6] : memref<16x2xf32, #tpu.memory_space<vmem>>, vector<16x2xf32>
    %13 = vector.broadcast %11 : vector<16x1xf32> to vector<16x2xf32>
    %14 = arith.mulf %12, %13 : vector<16x2xf32>
    %cst_7 = arith.constant dense<0.000000e+00> : vector<2xf32>
    %15 = vector.multi_reduction <add>, %14, %cst_7 [0] : vector<16x2xf32> to vector<2xf32>
    %16 = vector.shape_cast %15 : vector<2xf32> to vector<1x2xf32>
    %cst_8 = arith.constant 0.000000e+00 : f32
    %17 = vector.broadcast %cst_8 : f32 to vector<1x2xf32>
    %18 = arith.maximumf %16, %17 : vector<1x2xf32>
    %c0_9 = arith.constant 0 : index
    %c0_10 = arith.constant 0 : index
    %19 = vector.load %arg3[%c0_9, %c0_10] : memref<16x2xf32, #tpu.memory_space<vmem>>, vector<16x2xf32>
    %20 = vector.broadcast %18 : vector<1x2xf32> to vector<16x2xf32>
    %21 = arith.mulf %19, %20 : vector<16x2xf32>
    %cst_11 = arith.constant dense<0.000000e+00> : vector<16xf32>
    %22 = vector.multi_reduction <add>, %21, %cst_11 [1] : vector<16x2xf32> to vector<16xf32>
    %23 = vector.shape_cast %22 : vector<16xf32> to vector<16x1xf32>
    %24 = arith.negf %23 : vector<16x1xf32>
    %25 = math.exp %24 : vector<16x1xf32>
    %cst_12 = arith.constant 1.000000e+00 : f32
    %26 = vector.broadcast %cst_12 : f32 to vector<16x1xf32>
    %27 = arith.addf %26, %25 : vector<16x1xf32>
    %28 = arith.divf %26, %27 : vector<16x1xf32>
    %c0_13 = arith.constant 0 : index
    %c0_14 = arith.constant 0 : index
    %c0_15 = arith.constant 0 : index
    %29 = vector.load %arg1[%c0_13, %c0_14, %c0_15] : memref<1x16x576xf32, #tpu.memory_space<vmem>>, vector<1x16x576xf32>
    %30 = vector.shape_cast %29 : vector<1x16x576xf32> to vector<16x576xf32>
    %31 = vector.broadcast %28 : vector<16x1xf32> to vector<16x576xf32>
    %32 = arith.mulf %30, %31 : vector<16x576xf32>
    %c0_16 = arith.constant 0 : index
    %c0_17 = arith.constant 0 : index
    %c0_18 = arith.constant 0 : index
    %33 = vector.load %arg4[%c0_16, %c0_17, %c0_18] : memref<1x16x576xf32, #tpu.memory_space<vmem>>, vector<1x16x576xf32>
    %34 = vector.shape_cast %33 : vector<1x16x576xf32> to vector<16x576xf32>
    %35 = vector.shape_cast %32 : vector<16x576xf32> to vector<1x16x576xf32>
    tpu.vector_store %arg4[%c0_16, %c0_17, %c0_18], %35 {strides = array<i32>} : memref<1x16x576xf32, #tpu.memory_space<vmem>>, vector<1x16x576xf32>,
    return
  }
  func.func @transform_0(%arg0: i32) -> (i32, i32, i32) {
    %c0_i32 = arith.constant 0 : i32
    %c0_i32_0 = arith.constant 0 : i32
    %c0_i32_1 = arith.constant 0 : i32
    return %arg0, %c0_i32, %c0_i32_0 : i32, i32, i32
  }
  func.func @transform_1(%arg0: i32) -> (i32, i32) {
    %c0_i32 = arith.constant 0 : i32
    %c0_i32_0 = arith.constant 0 : i32
    %c0_i32_1 = arith.constant 0 : i32
    return %c0_i32, %c0_i32_0 : i32, i32
  }
  func.func @transform_2(%arg0: i32) -> (i32, i32) {
    %c0_i32 = arith.constant 0 : i32
    %c0_i32_0 = arith.constant 0 : i32
    %c0_i32_1 = arith.constant 0 : i32
    return %c0_i32, %c0_i32_0 : i32, i32
  }
  func.func @transform_3(%arg0: i32) -> (i32, i32, i32) {
    %c0_i32 = arith.constant 0 : i32
    %c0_i32_0 = arith.constant 0 : i32
    %c0_i32_1 = arith.constant 0 : i32
    return %arg0, %c0_i32, %c0_i32_0 : i32, i32, i32
  }
}

</mosaic_0001>

<llo_original>
// kernel: tpu_custom_call.1
$region0: #{tpu_custom_call.1}
  #allocation0 [shape = 'u32[]', space=smem, size = 0x4, offset = 0x4, fixed_abs, tag = 'smem constant byte address 0x4 - core index']
  #allocation1 [shape = 'u32[72,128]{1,0:T(1,128)}', space=vmem, size = 0x9000, scoped, tag = 'internal scratch']
  %s0 = inlined_call_operand.hbm [shape: f32[2,16,576], index: 0, kind: input, shape index: {}]
  %s1 = inlined_call_operand.vmem [shape: f32[16,2], index: 1, kind: input, shape index: {}]
  %s2 = inlined_call_operand.vmem [shape: f32[16,2], index: 2, kind: input, shape index: {}]
  %s3 = inlined_call_operand.hbm [shape: f32[2,16,576], index: 3, kind: output, shape index: {}]
  %s4 = sld [smem:[#allocation0]]
  $region56: #{tpu_custom_call.1} parent=0
    _
  %s6 = ssub.s32 1, %s4
  %s7 = scalar_select 0, %s6, %s4
  $region1: #{tpu_custom_call.1} parent=0
    #allocation2 [shape = 'u8[81920]{0}', space=vmem, size = 0x14000, scoped, tag = 'input window, operand 0']
    #allocation3 [shape = 's32[2]{0}', space=sflag, size = 0x8, scoped, tag = 'scoped memory for tpu_custom_call.1']
    #allocation4 [shape = 's32[2]{0}', space=sflag, size = 0x8, scoped, tag = 'scoped memory for tpu_custom_call.1']
    #allocation5 [shape = 'u8[81920]{0}', space=vmem, size = 0x14000, scoped, tag = 'output window, operand 0']
    %8 = vsyncpa [#allocation3], 0
    %s9 = scalar_lea.sflag [#allocation3], 1
    %10 = vsyncpa %s9, 0
    %11 = vsyncpa [#allocation4], 0
    %s12 = scalar_lea.sflag [#allocation4], 1
    %13 = vsyncpa %s12, 0
    loop: start=0, step=1, limit=4
    $region2: #{tpu_custom_call.1} parent=1 // loop_pre_header
      _
    $region3: #{tpu_custom_call.1} parent=1 // loop_header
      %s15 = sphi 0, %s19
      %p16 = scmp.ge.s32.totalorder %s15, 4
      %s25 = sphi 0, %s27
      %s28 = sphi 0, %s25
      %s29 = sphi 0, %s28
      %s45 = sphi 0, %s29
      %s49 = sphi 0, %s49
      %s51 = sphi 0, %s49
      %s52 = sphi 0, %s51
      %s66 = sphi 0, %s52
      %s70 = sphi 0, %s70
      %s72 = sphi 0, %s70
      %s73 = sphi 0, %s72
      %s87 = sphi 0, %s73
      %s93 = sphi 0, %s95
      %s96 = sphi 0, %s93
      %s97 = sphi 0, %s96
      %s113 = sphi 0, %s97
    $region4: #{tpu_custom_call.1} parent=1 // loop_header_branch
      %18 = sbr.rel (%p16) target = $region8
    $region5: #{tpu_custom_call.1} parent=1 // loop_body
      %s20 = ssub.s32 %s15, 1
      %s21 = ssub.s32 %s15, 2
      %s22 = sadd.s32 %s15, 1
      %s23 = ssub.s32 %s15, %s22
      %p24 = scmp.eq.s32.totalorder %s23, 0
      %s26 = sadd.s32 %s25, 1
      %s27 = scalar_select %p24, %s25, %s26
      %p30 = pneg %p24
      %p31 = scmp.eq.s32.totalorder %s15, 1
      %p32 = por %p30, %p31
      %p33 = scmp.ne.s32.totalorder %s25, %s28
      %p34 = scmp.eq.s32.totalorder %s15, 0
      %p35 = por %p33, %p34
      %p36 = scmp.ne.s32.totalorder %s25, %s28
      %p37 = scmp.eq.s32.totalorder %s20, 1
      %p38 = por %p36, %p37
      %p39 = scmp.ne.s32.totalorder %s28, %s29
      %p40 = scmp.eq.s32.totalorder %s20, 0
      %p41 = por %p39, %p40
      %p42 = scmp.ne.s32.totalorder %s28, %s29
      %p43 = scmp.eq.s32.totalorder %s21, 1
      %p44 = por %p42, %p43
      %p46 = scmp.ne.s32.totalorder %s29, %s45
      %p47 = scmp.eq.s32.totalorder %s21, 0
      %p48 = por %p46, %p47
      %s50 = sadd.s32 %s49, 1
      %p53 = scmp.eq.s32.totalorder %s15, 1
      %p54 = scmp.ne.s32.totalorder %s49, %s51
      %p55 = scmp.eq.s32.totalorder %s15, 0
      %p56 = por %p54, %p55
      %p57 = scmp.ne.s32.totalorder %s49, %s51
      %p58 = scmp.eq.s32.totalorder %s20, 1
      %p59 = por %p57, %p58
      %p60 = scmp.ne.s32.totalorder %s51, %s52
      %p61 = scmp.eq.s32.totalorder %s20, 0
      %p62 = por %p60, %p61
      %p63 = scmp.ne.s32.totalorder %s51, %s52
      %p64 = scmp.eq.s32.totalorder %s21, 1
      %p65 = por %p63, %p64
      %p67 = scmp.ne.s32.totalorder %s52, %s66
      %p68 = scmp.eq.s32.totalorder %s21, 0
      %p69 = por %p67, %p68
      %s71 = sadd.s32 %s70, 1
      %p74 = scmp.eq.s32.totalorder %s15, 1
      %p75 = scmp.ne.s32.totalorder %s70, %s72
      %p76 = scmp.eq.s32.totalorder %s15, 0
      %p77 = por %p75, %p76
      %p78 = scmp.ne.s32.totalorder %s70, %s72
      %p79 = scmp.eq.s32.totalorder %s20, 1
      %p80 = por %p78, %p79
      %p81 = scmp.ne.s32.totalorder %s72, %s73
      %p82 = scmp.eq.s32.totalorder %s20, 0
      %p83 = por %p81, %p82
      %p84 = scmp.ne.s32.totalorder %s72, %s73
      %p85 = scmp.eq.s32.totalorder %s21, 1
      %p86 = por %p84, %p85
      %p88 = scmp.ne.s32.totalorder %s73, %s87
      %p89 = scmp.eq.s32.totalorder %s21, 0
      %p90 = por %p88, %p89
      %s91 = ssub.s32 %s15, %s22
      %p92 = scmp.eq.s32.totalorder %s91, 0
      %s94 = sadd.s32 %s93, 1
      %s95 = scalar_select %p92, %s93, %s94
      %p98 = pneg %p92
      %p99 = scmp.eq.s32.totalorder %s15, 1
      %p100 = por %p98, %p99
      %p101 = scmp.ne.s32.totalorder %s93, %s96
      %p102 = scmp.eq.s32.totalorder %s15, 0
      %p103 = por %p101, %p102
      %p104 = scmp.ne.s32.totalorder %s93, %s96
      %p105 = scmp.eq.s32.totalorder %s20, 1
      %p106 = por %p104, %p105
      %p107 = scmp.ne.s32.totalorder %s96, %s97
      %p108 = scmp.eq.s32.totalorder %s20, 0
      %p109 = por %p107, %p108
      %p110 = scmp.ne.s32.totalorder %s96, %s97
      %p111 = scmp.eq.s32.totalorder %s21, 1
      %p112 = por %p110, %p111
      %p114 = scmp.ne.s32.totalorder %s97, %s113
      %p115 = scmp.eq.s32.totalorder %s21, 0
      %p116 = por %p114, %p115
      %p117 = scmp.le.s32.totalorder 1, %s15
      %p118 = scmp.lt.s32.totalorder %s15, 3
      %p119 = pnand %p117, %p118
      %p120 = pneg %p119
      // Predicated region
      $region9: #{tpu_custom_call.1} parent=5 // pred_check
        _
      $region10: #{tpu_custom_call.1} parent=5 // pred_check_branch
        %122 = sbr.rel (%p119) target = $region12
      $region11: #{tpu_custom_call.1} parent=5 // pred_region
        %s123 = ssub.s32 %s15, 1
        // Predicated region
        $region13: #{tpu_custom_call.1} parent=11 // pred_check
          %p124 = pneg %p62
        $region14: #{tpu_custom_call.1} parent=11 // pred_check_branch
          %126 = sbr.rel (%p124) target = $region16
        $region15: #{tpu_custom_call.1} parent=11 // pred_region
          _
        $region16: #{tpu_custom_call.1} parent=11 // pred_fallthru
          _
        // Predicated region
        $region17: #{tpu_custom_call.1} parent=11 // pred_check
          %p127 = pneg %p83
        $region18: #{tpu_custom_call.1} parent=11 // pred_check_branch
          %129 = sbr.rel (%p127) target = $region20
        $region19: #{tpu_custom_call.1} parent=11 // pred_region
          _
        $region20: #{tpu_custom_call.1} parent=11 // pred_fallthru
          _
      $region12: #{tpu_custom_call.1} parent=5 // pred_fallthru
        _
      %p130 = scmp.lt.s32.totalorder %s15, 2
      // Predicated region
      $region21: #{tpu_custom_call.1} parent=5 // pred_check
        %p131 = pneg %p130
      $region22: #{tpu_custom_call.1} parent=5 // pred_check_branch
        %133 = sbr.rel (%p131) target = $region24
      $region23: #{tpu_custom_call.1} parent=5 // pred_region
        // Predicated region
        $region25: #{tpu_custom_call.1} parent=23 // pred_check
          %p134 = pneg %p35
        $region26: #{tpu_custom_call.1} parent=23 // pred_check_branch
          %136 = sbr.rel (%p134) target = $region28
        $region27: #{tpu_custom_call.1} parent=23 // pred_region
          %s137 = sand.u32 %s25, 1
          %s138 = scalar_lea.sflag [#allocation3], %s137
          %s139 = sand.u32 %s25, 1
          %s140 = smul.addr %s139, 80
          %s141 = scalar_lea.vmem [#allocation2], %s140
          %143 = vsyncadd %s138, 0
          %s144 = smul.addr %s15, 10
          %s145 = smul.addr %s144, 8
          %s146 = scalar_lea.hbm %s0, %s145
          %s147 = sshll.u32 %s146, 4
          %s148 = int_to_ptr.hbm [resolvable:$true] %s147
          %s149 = sshll.u32 %s141, 4
          %s150 = int_to_ptr.vmem [resolvable:$true] %s149
          %155 = dma.hbm_to_vmem [thread:$0]  %s148, 1280, %s150, %s138, 640, 640, 40
        $region28: #{tpu_custom_call.1} parent=23 // pred_fallthru
          _
      $region24: #{tpu_custom_call.1} parent=5 // pred_fallthru
        _
      %p156 = scmp.le.s32.totalorder 1, %s15
      %p157 = scmp.lt.s32.totalorder %s15, 3
      %p158 = pnand %p156, %p157
      %p159 = pneg %p158
      // Predicated region
      $region29: #{tpu_custom_call.1} parent=5 // pred_check
        _
      $region30: #{tpu_custom_call.1} parent=5 // pred_check_branch
        %161 = sbr.rel (%p158) target = $region32
      $region31: #{tpu_custom_call.1} parent=5 // pred_region
        %s162 = ssub.s32 %s15, 1
        %s163 = sand.u32 %s28, 1
        %s164 = scalar_lea.sflag [#allocation3], %s163
        %s165 = sand.u32 %s28, 1
        %s166 = smul.addr %s165, 80
        %s167 = scalar_lea.vmem [#allocation2], %s166
        // Predicated region
        $region33: #{tpu_custom_call.1} parent=31 // pred_check
          %p168 = pneg %p41
        $region34: #{tpu_custom_call.1} parent=31 // pred_check_branch
          %170 = sbr.rel (%p168) target = $region36
        $region35: #{tpu_custom_call.1} parent=31 // pred_region
          %172 = dma.done %s164, 1280
        $region36: #{tpu_custom_call.1} parent=31 // pred_fallthru
          _
        %s173 = sand.u32 %s28, 1
        %s174 = scalar_lea.sflag [#allocation3], %s173
        %s175 = sand.u32 %s28, 1
        %s176 = smul.addr %s175, 80
        %s177 = scalar_lea.vmem [#allocation2], %s176
        %p178 = pneg %p41
        %p179 = pneg %p38
        %p180 = pneg %p62
        %p181 = pneg %p59
        %p182 = pneg %p83
        %p183 = pneg %p80
        %p184 = pneg %p109
        %p185 = pneg %p106
        %s186 = sand.u32 %s96, 1
        %s187 = scalar_lea.sflag [#allocation4], %s186
        %s188 = sand.u32 %s96, 1
        %s189 = smul.addr %s188, 80
        %s190 = scalar_lea.vmem [#allocation5], %s189
        loop: start=0, step=1, limit=4
        $region37: #{tpu_custom_call.1} parent=31 // loop_pre_header
          _
        $region38: #{tpu_custom_call.1} parent=31 // loop_header
          %s192 = sphi 0, %s196
          %p193 = scmp.ge.s32.totalorder %s192, 4
          %v197 = vphi 0.0, %v206
          %v198 = vphi 0.0, %v207
        $region39: #{tpu_custom_call.1} parent=31 // loop_header_branch
          %195 = sbr.rel (%p193) target = $region43
        $region40: #{tpu_custom_call.1} parent=31 // loop_body
          %s199 = smul.u32 %s192, 128
          %s200 = sshra.s32 %s199, 7
          %s201 = sand.u32 %s199, 127
          %s202 = smul.addr %s200, 8
          %s203 = scalar_lea.vmem %s167, %s202 [#allocation2]
          %v204 = vld [vmem:[%s203] sm:$0xff]
          %v205 = vld [vmem:[%s203 + $0x28] sm:$0xff]
          %v206 = vadd.f32 %v197, %v204
          %v207 = vadd.f32 %v198, %v205
        $region41: #{tpu_custom_call.1} parent=31 // loop_footer
          %s196 = sadd.s32 1, %s192
        $region42: #{tpu_custom_call.1} parent=31 // loop_footer_branch
          %191 = sbr.rel target = $region38
        $region43: #{tpu_custom_call.1} parent=31 // loop_exit
          _
        %208 = vadd.xlane.f32.xlu0 %v197
        %v209 = vpop.xlane.xlu0 %208
        %210 = vadd.xlane.f32.xlu0 %v198
        %v211 = vpop.xlane.xlu0 %210
        %v212 = vld [vmem:[%s167 + $0x20] sm:$0xff]
        %v213 = vld [vmem:[%s167 + $0x48] sm:$0xff]
        %vm214 = vcmask 523264
        %v215 = vsel %vm214, %v212, 0.0
        %216 = vadd.xlane.f32.xlu0 %v215
        %v217 = vpop.xlane.xlu0 %216
        %v218 = vsel %vm214, %v213, 0.0
        %219 = vadd.xlane.f32.xlu0 %v218
        %v220 = vpop.xlane.xlu0 %219
        %v221 = vadd.f32 %v209, %v217
        %v222 = vadd.f32 %v211, %v220
        %v223 = vmul.f32 %v221, 0.0017361111
        %v224 = vmul.f32 %v222, 0.0017361111
        %v225 = vld [vmem:[%s1] sm:$0xff]
        %v226 = vld [vmem:[%s1 + $0x8] sm:$0xff]
        %v227 = vmul.f32 %v225, %v223
        %v228 = vmul.f32 %v226, %v224
        %vm229 = vcmask 15360
        %v230 = vsel %vm229, %v227, 0.0
        %v231 = vsel %vm229, %v228, 0.0
        %v232 = vadd.f32 %v230, %v231
        %v233 = vrot.slane %v232, 4
        %v234 = vadd.f32 %v232, %v233
        %v235 = vrot.slane %v234, 2
        %v236 = vadd.f32 %v234, %v235
        %v237 = vrot.slane %v236, 1
        %v238 = vadd.f32 %v236, %v237
        %v239 = vmax.f32 %v238, 0.0
        %v240 = vld [vmem:[%s2] sm:$0xff]
        %v241 = vld [vmem:[%s2 + $0x8] sm:$0xff]
        %v242 = vmul.f32 %v240, %v239
        %v243 = vmul.f32 %v241, %v239
        %v244 = vsel %vm229, %v242, 0.0
        %245 = vadd.xlane.f32.xlu0 %v244
        %v246 = vpop.xlane.xlu0 %245
        %v247 = vsel %vm229, %v243, 0.0
        %248 = vadd.xlane.f32.xlu0 %v247
        %v249 = vpop.xlane.xlu0 %248
        %v250 = vxor.u32 %v246, 2147483648
        %v251 = vxor.u32 %v249, 2147483648
        %v252 = vmul.f32 %v250, 1.442695
        %v253 = vpow.pop %v252
        %v254 = vmul.f32 %v251, 1.442695
        %v255 = vpow.pop %v254
        %v256 = vadd.f32 %v253, 1.0
        %v257 = vadd.f32 %v255, 1.0
        %v258 = vrcp.pop %v256
        %v259 = vmul.f32 %v256, %v258
        %v260 = vsub.f32 1.0, %v259
        %v261 = vmul.f32 %v258, %v260
        %v262 = vadd.f32 %v258, %v261
        %vm263 = vweird.f32 %v256
        %vm264 = vweird.f32 %v258
        %vm265 = vmor %vm263, %vm264
        %v266 = vsel %vm265, %v258, %v262
        %v267 = vand.u32 2147483647, %v256
        %vm268 = vcmp.eq.f32.partialorder %v267, 8.507059e+37
        %v269 = vand.u32 %v256, 2147483648
        %v270 = vor.u32 1.1754944e-38, %v269
        %v271 = vsel %vm268, %v270, %v266
        %v272 = vmul.f32 1.0, %v271
        %v273 = vrcp.pop %v257
        %v274 = vmul.f32 %v257, %v273
        %v275 = vsub.f32 1.0, %v274
        %v276 = vmul.f32 %v273, %v275
        %v277 = vadd.f32 %v273, %v276
        %vm278 = vweird.f32 %v257
        %vm279 = vweird.f32 %v273
        %vm280 = vmor %vm278, %vm279
        %v281 = vsel %vm280, %v273, %v277
        %v282 = vand.u32 2147483647, %v257
        %vm283 = vcmp.eq.f32.partialorder %v282, 8.507059e+37
        %v284 = vand.u32 %v257, 2147483648
        %v285 = vor.u32 1.1754944e-38, %v284
        %v286 = vsel %vm283, %v285, %v281
        %v287 = vmul.f32 1.0, %v286
        %v288 = vld [vmem:[%s167] sm:$0xff]
        %v289 = vld [vmem:[%s167 + $0x8] sm:$0xff]
        %v290 = vld [vmem:[%s167 + $0x10] sm:$0xff]
        %v291 = vld [vmem:[%s167 + $0x18] sm:$0xff]
        %v292 = vld [vmem:[%s167 + $0x28] sm:$0xff]
        %v293 = vld [vmem:[%s167 + $0x30] sm:$0xff]
        %v294 = vld [vmem:[%s167 + $0x38] sm:$0xff]
        %v295 = vld [vmem:[%s167 + $0x40] sm:$0xff]
        %v296 = vmul.f32 %v288, %v272
        %v297 = vmul.f32 %v289, %v272
        %v298 = vmul.f32 %v290, %v272
        %v299 = vmul.f32 %v291, %v272
        %v300 = vmul.f32 %v212, %v272
        %v301 = vmul.f32 %v292, %v287
        %v302 = vmul.f32 %v293, %v287
        %v303 = vmul.f32 %v294, %v287
        %v304 = vmul.f32 %v295, %v287
        %v305 = vmul.f32 %v213, %v287
        %306 = vst [vmem:[%s190] sm:$0xff] %v296
        %307 = vst [vmem:[%s190 + $0x8] sm:$0xff] %v297
        %308 = vst [vmem:[%s190 + $0x10] sm:$0xff] %v298
        %309 = vst [vmem:[%s190 + $0x18] sm:$0xff] %v299
        %310 = vst.msk [vmem:[%s190 + $0x20] sm:$0xff] %vm214, %v300
        %311 = vst [vmem:[%s190 + $0x28] sm:$0xff] %v301
        %312 = vst [vmem:[%s190 + $0x30] sm:$0xff] %v302
        %313 = vst [vmem:[%s190 + $0x38] sm:$0xff] %v303
        %314 = vst [vmem:[%s190 + $0x40] sm:$0xff] %v304
        %315 = vst.msk [vmem:[%s190 + $0x48] sm:$0xff] %vm214, %v305
        %s316 = sand.u32 %s96, 1
        %s317 = scalar_lea.sflag [#allocation4], %s316
        %s318 = sand.u32 %s96, 1
        %s319 = smul.addr %s318, 80
        %s320 = scalar_lea.vmem [#allocation5], %s319
        // Predicated region
        $region44: #{tpu_custom_call.1} parent=31 // pred_check
          %p321 = pneg %p106
        $region45: #{tpu_custom_call.1} parent=31 // pred_check_branch
          %323 = sbr.rel (%p321) target = $region47
        $region46: #{tpu_custom_call.1} parent=31 // pred_region
          %325 = vsyncadd %s317, 0
          %s326 = smul.addr %s20, 10
          %s327 = smul.addr %s326, 8
          %s328 = scalar_lea.hbm %s3, %s327
          %s329 = sshll.u32 %s320, 4
          %s330 = int_to_ptr.vmem [resolvable:$true] %s329
          %s331 = sshll.u32 %s328, 4
          %s332 = int_to_ptr.hbm [resolvable:$true] %s331
          %337 = dma.vmem_to_hbm [thread:$0]  %s330, 1280, %s332, %s317, 640, 640, 40
        $region47: #{tpu_custom_call.1} parent=31 // pred_fallthru
          _
      $region32: #{tpu_custom_call.1} parent=5 // pred_fallthru
        _
      %p338 = scmp.le.s32.totalorder 2, %s15
      // Predicated region
      $region48: #{tpu_custom_call.1} parent=5 // pred_check
        %p339 = pneg %p338
      $region49: #{tpu_custom_call.1} parent=5 // pred_check_branch
        %341 = sbr.rel (%p339) target = $region51
      $region50: #{tpu_custom_call.1} parent=5 // pred_region
        %s342 = ssub.s32 %s15, 2
        // Predicated region
        $region52: #{tpu_custom_call.1} parent=50 // pred_check
          %p343 = pneg %p112
        $region53: #{tpu_custom_call.1} parent=50 // pred_check_branch
          %345 = sbr.rel (%p343) target = $region55
        $region54: #{tpu_custom_call.1} parent=50 // pred_region
          %s346 = sand.u32 %s97, 1
          %s347 = scalar_lea.sflag [#allocation4], %s346
          %s348 = sand.u32 %s97, 1
          %s349 = smul.addr %s348, 80
          %s350 = scalar_lea.vmem [#allocation5], %s349
          %352 = dma.done %s347, 1280
        $region55: #{tpu_custom_call.1} parent=50 // pred_fallthru
          _
      $region51: #{tpu_custom_call.1} parent=5 // pred_fallthru
        _
    $region6: #{tpu_custom_call.1} parent=1 // loop_footer
      %s19 = sadd.s32 1, %s15
    $region7: #{tpu_custom_call.1} parent=1 // loop_footer_branch
      %14 = sbr.rel target = $region3
    $region8: #{tpu_custom_call.1} parent=1 // loop_exit
      _
    %353 = vsyncpa [#allocation3], 1
    %s354 = scalar_lea.sflag [#allocation3], 1
    %355 = vsyncpa %s354, 1
    %356 = vsyncpa [#allocation4], 1
    %s357 = scalar_lea.sflag [#allocation4], 1
    %358 = vsyncpa %s357, 1

</llo_original>
